<compile_context>
chip_gen: v6e
topology: v6e:2x2x1
jax: 0.10.0
libtpu: 0.0.40
codegen_flags: <defaults>
</compile_context>

<pallas_src>
import functools

import jax
import jax.numpy as jnp
from jax.experimental import pallas as pl
from jax.experimental.pallas import tpu as pltpu

LANES = 128
SUBLANES = 8
MAX_TILE_ROWS = 8192          # 8192 x 128 x f32 = 4 MiB per input tile
NUM_CORE_SLICES = 2           # outer "parallel" axis (both TCs on v7x; no-op on 1-TC chips)
VMEM_LIMIT_BYTES = 32 * 1024 * 1024


def _focal_loss_kernel(x_ref, t_ref, o_ref, *, gamma, eps, tile_rows,
                       steps_per_slice, steps_total, rem_last, binary_targets):
    c = pl.program_id(0)            # core-slice index ("parallel")
    i = pl.program_id(1)            # streaming step within the slice ("arbitrary")
    b = c * steps_per_slice + i     # global block index (may exceed the last valid block)
    last_b = steps_total - 1

    # o_ref is this slice's (8, 128) partial-sum accumulator; its block index
    # depends only on `c`, so it stays resident across the inner axis.
    @pl.when(i == 0)
    def _():
        o_ref[...] = jnp.zeros_like(o_ref)

    x = x_ref[...].astype(jnp.float32)
    t = t_ref[...].astype(jnp.float32)

    x = jnp.clip(x, eps, 1.0 - eps)
    if binary_targets:
        # Valid only for hard 0/1 targets: one EUP log per element instead of two.
        p = jnp.where(t > 0.5, x, 1.0 - x)
        loss = -((1.0 - p) ** gamma) * jnp.log(p)
    else:
        one_minus_x = 1.0 - x
        # gamma is a static Python int -> integer_pow -> plain VPU multiplies.
        loss = -(t * (one_minus_x ** gamma) * jnp.log(x)
                 + (1.0 - t) * (x ** gamma) * jnp.log(one_minus_x))

    def fold(v):
        # (tile_rows, 128) -> (8, 128) via vreg-wise adds (pure VPU, no XLU).
        return v.reshape(tile_rows // SUBLANES, SUBLANES, LANES).sum(axis=0)

    if rem_last == tile_rows * LANES:
        # No padding and no partial last block: completely mask-free path.
        @pl.when(b <= last_b)
        def _():
            o_ref[...] += fold(loss)
    else:
        # Full blocks: unmasked hot path.
        @pl.when(b < last_b)
        def _():
            o_ref[...] += fold(loss)

        # Last block only: mask padded / out-of-bounds tail.  Index math is
        # relative to the block start, so it stays well inside int32 range.
        @pl.when(b == last_b)
        def _():
            row = jax.lax.broadcasted_iota(jnp.int32, loss.shape, 0)
            lane = jax.lax.broadcasted_iota(jnp.int32, loss.shape, 1)
            masked = jnp.where(row * LANES + lane < rem_last, loss, 0.0)
            o_ref[...] += fold(masked)
    # Steps with b > last_b (clamped duplicate reads on the second slice)
    # contribute nothing.


def focal_loss(inp, target, gamma=2, eps=1e-3, binary_targets=False):
    assert inp.shape == target.shape
    n_valid = inp.size

    flat_x = inp.reshape(-1)
    flat_t = target.reshape(-1)

    # Pad only when numel is not already a whole number of (sub_pack x 128)
    # rows; for typical NCHW shapes this branch is skipped entirely (no extra
    # HBM copy of the inputs).
    itemsize = min(inp.dtype.itemsize, target.dtype.itemsize)
    sub_pack = {4: SUBLANES, 2: 2 * SUBLANES, 1: 4 * SUBLANES}.get(itemsize, SUBLANES)
    align = sub_pack * LANES
    n_padded = -(-n_valid // align) * align
    pad = n_padded - n_valid
    if pad:
        # TODO(synk): jnp.pad copies both inputs; only hit when numel % align != 0.
        flat_x = jnp.pad(flat_x, (0, pad))
        flat_t = jnp.pad(flat_t, (0, pad))

    rows = n_padded // LANES
    tile_rows = min(MAX_TILE_ROWS, rows)
    steps_total = -(-rows // tile_rows)                 # partial last block allowed
    steps_per_slice = -(-steps_total // NUM_CORE_SLICES)
    last_b = steps_total - 1
    rem_last = n_valid - last_b * tile_rows * LANES     # valid elements in last block

    x2d = flat_x.reshape(rows, LANES)
    t2d = flat_t.reshape(rows, LANES)

    def in_map(c, i):
        # Clamp so out-of-range steps on a slice re-read the last valid block
        # (their contribution is skipped inside the kernel).
        return (jnp.minimum(c * steps_per_slice + i, last_b), 0)

    kernel = functools.partial(
        _focal_loss_kernel,
        gamma=int(gamma), eps=float(eps), tile_rows=tile_rows,
        steps_per_slice=steps_per_slice, steps_total=steps_total,
        rem_last=rem_last, binary_targets=bool(binary_targets))

    partials = pl.pallas_call(
        kernel,
        out_shape=jax.ShapeDtypeStruct((NUM_CORE_SLICES * SUBLANES, LANES),
                                       jnp.float32),
        grid_spec=pltpu.PrefetchScalarGridSpec(
            num_scalar_prefetch=0,
            grid=(NUM_CORE_SLICES, steps_per_slice),
            in_specs=[
                pl.BlockSpec((tile_rows, LANES), in_map),
                pl.BlockSpec((tile_rows, LANES), in_map),
            ],
            out_specs=pl.BlockSpec((SUBLANES, LANES), lambda c, i: (c, 0)),
        ),
        compiler_params=pltpu.CompilerParams(
            dimension_semantics=("parallel", "arbitrary"),
            vmem_limit_bytes=VMEM_LIMIT_BYTES),
    )(x2d, t2d)

    # One tiny cross-lane reduce + mean outside the kernel.
    return jnp.sum(partials) / n_valid


def focal_loss_ref(inp, target, gamma=2, eps=1e-3):
    x = jnp.clip(inp.astype(jnp.float32), eps, 1.0 - eps)
    t = target.astype(jnp.float32)
    loss = -(t * (1.0 - x) ** gamma * jnp.log(x)
             + (1.0 - t) * x ** gamma * jnp.log(1.0 - x))
    return jnp.mean(loss)


if __name__ == "__main__":
    key = jax.random.PRNGKey(0)
    k1, k2, k3, k4 = jax.random.split(key, 4)

    # NCHW sigmoid-probability inputs and binary targets, as the module expects.
    x = jax.random.uniform(k1, (2, 4, 16, 16), dtype=jnp.float32)
    target = (jax.random.uniform(k2, (2, 4, 16, 16)) > 0.5).astype(jnp.float32)

    out = jax.block_until_ready(focal_loss(x, target))
    ref = focal_loss_ref(x, target)
    assert jnp.allclose(out, ref, rtol=1e-5, atol=1e-5), (out, ref)

    # Odd numel: exercises the padded / masked last-block path.
    x2 = jax.random.uniform(k3, (3, 5, 7, 11), dtype=jnp.float32)
    t2 = (jax.random.uniform(k4, (3, 5, 7, 11)) > 0.5).astype(jnp.float32)
    out2 = jax.block_until_ready(focal_loss(x2, t2))
    ref2 = focal_loss_ref(x2, t2)
    assert jnp.allclose(out2, ref2, rtol=1e-5, atol=1e-5), (out2, ref2)

    print("KERNEL_OK")
</pallas_src>

<mosaic_0001>
module attributes {stable_mosaic.version = 11 : i64} {
  func.func @_focal_loss_kernel(%arg0: i32, %arg1: i32, %arg2: memref<16x128xf32, #tpu.memory_space<vmem>>, %arg3: memref<16x128xf32, #tpu.memory_space<vmem>>, %arg4: memref<8x128xf32, #tpu.memory_space<vmem>>) attributes {dimension_semantics = [#tpu.dimension_semantics<parallel>, #tpu.dimension_semantics<arbitrary>], iteration_bounds = array<i64: 2, 1>, scalar_prefetch = 0 : i64, scratch_operands = 0 : i64, tpu.core_type = #tpu.core_type<tc>, window_params = [{transform_indices = @transform_0, window_bounds = array<i64: 16, 128>}, {transform_indices = @transform_1, window_bounds = array<i64: 16, 128>}, {transform_indices = @transform_2, window_bounds = array<i64: 8, 128>}]} {
    %c1_i32 = arith.constant 1 : i32
    %0 = arith.muli %arg0, %c1_i32 : i32
    %1 = arith.addi %0, %arg1 : i32
    %c0_i32 = arith.constant 0 : i32
    %2 = arith.cmpi eq, %arg1, %c0_i32 : i32
    %3 = arith.extui %2 : i1 to i32
    %c0_i32_0 = arith.constant 0 : i32
    %4 = arith.cmpi ne, %3, %c0_i32_0 : i32
    scf.if %4 {
      %cst_10 = arith.constant 0.000000e+00 : f32
      %29 = vector.broadcast %cst_10 : f32 to vector<8x128xf32>
      %c0_11 = arith.constant 0 : index
      %c0_12 = arith.constant 0 : index
      %30 = vector.load %arg4[%c0_11, %c0_12] : memref<8x128xf32, #tpu.memory_space<vmem>>, vector<8x128xf32>
      tpu.vector_store %arg4[%c0_11, %c0_12], %29 {strides = array<i32>} : memref<8x128xf32, #tpu.memory_space<vmem>>, vector<8x128xf32>,
    } else {
    }
    %c0 = arith.constant 0 : index
    %c0_1 = arith.constant 0 : index
    %5 = vector.load %arg2[%c0, %c0_1] : memref<16x128xf32, #tpu.memory_space<vmem>>, vector<16x128xf32>
    %c0_2 = arith.constant 0 : index
    %c0_3 = arith.constant 0 : index
    %6 = vector.load %arg3[%c0_2, %c0_3] : memref<16x128xf32, #tpu.memory_space<vmem>>, vector<16x128xf32>
    %cst = arith.constant 1.000000e-03 : f32
    %cst_4 = arith.constant 9.990000e-01 : f32
    %7 = vector.broadcast %cst : f32 to vector<16x128xf32>
    %8 = arith.maximumf %7, %5 : vector<16x128xf32>
    %9 = vector.broadcast %cst_4 : f32 to vector<16x128xf32>
    %10 = arith.minimumf %9, %8 : vector<16x128xf32>
    %cst_5 = arith.constant 1.000000e+00 : f32
    %11 = vector.broadcast %cst_5 : f32 to vector<16x128xf32>
    %12 = arith.subf %11, %10 : vector<16x128xf32>
    %13 = arith.mulf %12, %12 : vector<16x128xf32>
    %14 = arith.mulf %6, %13 : vector<16x128xf32>
    %15 = math.log %10 : vector<16x128xf32>
    %16 = arith.mulf %14, %15 : vector<16x128xf32>
    %cst_6 = arith.constant 1.000000e+00 : f32
    %17 = vector.broadcast %cst_6 : f32 to vector<16x128xf32>
    %18 = arith.subf %17, %6 : vector<16x128xf32>
    %19 = arith.mulf %10, %10 : vector<16x128xf32>
    %20 = arith.mulf %18, %19 : vector<16x128xf32>
    %21 = math.log %12 : vector<16x128xf32>
    %22 = arith.mulf %20, %21 : vector<16x128xf32>
    %23 = arith.addf %16, %22 : vector<16x128xf32>
    %cst_7 = arith.constant 0.000000e+00 : f32
    %24 = vector.broadcast %cst_7 : f32 to vector<16x128xf32>
    %25 = arith.subf %24, %23 : vector<16x128xf32>
    %c0_i32_8 = arith.constant 0 : i32
    %26 = arith.cmpi sle, %1, %c0_i32_8 : i32
    %27 = arith.extui %26 : i1 to i32
    %c0_i32_9 = arith.constant 0 : i32
    %28 = arith.cmpi ne, %27, %c0_i32_9 : i32
    scf.if %28 {
      %c0_10 = arith.constant 0 : index
      %c0_11 = arith.constant 0 : index
      %29 = vector.load %arg4[%c0_10, %c0_11] : memref<8x128xf32, #tpu.memory_space<vmem>>, vector<8x128xf32>
      %30 = vector.shape_cast %25 : vector<16x128xf32> to vector<2x8x128xf32>
      %cst_12 = arith.constant dense<0.000000e+00> : vector<8x128xf32>
      %31 = vector.multi_reduction <add>, %30, %cst_12 [0] : vector<2x8x128xf32> to vector<8x128xf32>
      %32 = arith.addf %29, %31 : vector<8x128xf32>
      %c0_13 = arith.constant 0 : index
      %c0_14 = arith.constant 0 : index
      %33 = vector.load %arg4[%c0_13, %c0_14] : memref<8x128xf32, #tpu.memory_space<vmem>>, vector<8x128xf32>
      tpu.vector_store %arg4[%c0_13, %c0_14], %32 {strides = array<i32>} : memref<8x128xf32, #tpu.memory_space<vmem>>, vector<8x128xf32>,
    } else {
    }
    return
  }
  func.func @transform_0(%arg0: i32, %arg1: i32) -> (i32, i32) {
    %c1_i32 = arith.constant 1 : i32
    %0 = arith.muli %arg0, %c1_i32 : i32
    %1 = arith.addi %0, %arg1 : i32
    %c0_i32 = arith.constant 0 : i32
    %2 = arith.minsi %1, %c0_i32 : i32
    %c0_i32_0 = arith.constant 0 : i32
    %c0_i32_1 = arith.constant 0 : i32
    return %2, %c0_i32_0 : i32, i32
  }
  func.func @transform_1(%arg0: i32, %arg1: i32) -> (i32, i32) {
    %c1_i32 = arith.constant 1 : i32
    %0 = arith.muli %arg0, %c1_i32 : i32
    %1 = arith.addi %0, %arg1 : i32
    %c0_i32 = arith.constant 0 : i32
    %2 = arith.minsi %1, %c0_i32 : i32
    %c0_i32_0 = arith.constant 0 : i32
    %c0_i32_1 = arith.constant 0 : i32
    return %2, %c0_i32_0 : i32, i32
  }
  func.func @transform_2(%arg0: i32, %arg1: i32) -> (i32, i32) {
    %c0_i32 = arith.constant 0 : i32
    %c0_i32_0 = arith.constant 0 : i32
    return %arg0, %c0_i32 : i32, i32
  }
}

</mosaic_0001>

<llo_original>
// kernel: tpu_custom_call.1
$region0: #{tpu_custom_call.1}
  #allocation0 [shape = 'u32[]', space=smem, size = 0x4, offset = 0x4, fixed_abs, tag = 'smem constant byte address 0x4 - core index']
  #allocation1 [shape = 'u32[144,128]{1,0:T(1,128)}', space=vmem, size = 0x12000, scoped, tag = 'internal scratch']
  %s0 = inlined_call_operand.hbm [shape: f32[16,128], index: 0, kind: input, shape index: {}]
  %s1 = inlined_call_operand.hbm [shape: f32[16,128], index: 1, kind: input, shape index: {}]
  %s2 = inlined_call_operand.hbm [shape: f32[16,128], index: 2, kind: output, shape index: {}]
  %s3 = sld [smem:[#allocation0]]
  $region57: #{tpu_custom_call.1} parent=0
    _
  %s5 = ssub.s32 1, %s3
  %s6 = scalar_select 0, %s5, %s3
  $region1: #{tpu_custom_call.1} parent=0
    #allocation2 [shape = 'u8[16384]{0}', space=vmem, size = 0x4000, scoped, tag = 'input window, operand 0']
    #allocation3 [shape = 's32[2]{0}', space=sflag, size = 0x8, scoped, tag = 'scoped memory for tpu_custom_call.1']
    #allocation4 [shape = 's32[2]{0}', space=sflag, size = 0x8, scoped, tag = 'scoped memory for tpu_custom_call.1']
    #allocation5 [shape = 'u8[16384]{0}', space=vmem, size = 0x4000, scoped, tag = 'input window, operand 1']
    #allocation6 [shape = 's32[2]{0}', space=sflag, size = 0x8, scoped, tag = 'scoped memory for tpu_custom_call.1']
    #allocation7 [shape = 'u8[8192]{0}', space=vmem, size = 0x2000, scoped, tag = 'output window, operand 0']
    %7 = vsyncpa [#allocation3], 0
    %s8 = scalar_lea.sflag [#allocation3], 1
    %9 = vsyncpa %s8, 0
    %10 = vsyncpa [#allocation6], 0
    %s11 = scalar_lea.sflag [#allocation6], 1
    %12 = vsyncpa %s11, 0
    %13 = vsyncpa [#allocation4], 0
    %s14 = scalar_lea.sflag [#allocation4], 1
    %15 = vsyncpa %s14, 0
    loop: start=0, step=1, limit=4
    $region2: #{tpu_custom_call.1} parent=1 // loop_pre_header
      _
    $region3: #{tpu_custom_call.1} parent=1 // loop_header
      %s17 = sphi 0, %s21
      %p18 = scmp.ge.s32.totalorder %s17, 4
      %s24 = sphi 0, %s36
      %s25 = sphi 0, %s32
      %s26 = sphi 0, %s24
      %s27 = sphi 0, %s25
      %s28 = sphi 0, %s26
      %s29 = sphi 0, %s27
      %s45 = sphi 0, %s47
      %s48 = sphi 0, %s45
      %s49 = sphi 0, %s48
      %s65 = sphi 0, %s49
      %s77 = sphi 0, %s79
      %s80 = sphi 0, %s77
      %s81 = sphi 0, %s80
      %s97 = sphi 0, %s81
      %s103 = sphi 0, %s105
      %s106 = sphi 0, %s103
      %s107 = sphi 0, %s106
      %s123 = sphi 0, %s107
    $region4: #{tpu_custom_call.1} parent=1 // loop_header_branch
      %20 = sbr.rel (%p18) target = $region8
    $region5: #{tpu_custom_call.1} parent=1 // loop_body
      %s22 = ssub.s32 %s17, 1
      %s23 = ssub.s32 %s17, 2
      %s30 = sadd.s32 1, %s25
      %p31 = scmp.ge.s32.totalorder %s30, 1
      %s32 = scalar_select %p31, 0, %s30
      %s33 = sadd.s32 1, %s24
      %s34 = scalar_select %p31, %s33, %s24
      %p35 = scmp.ge.s32.totalorder %s34, 2
      %s36 = scalar_select %p35, 0, %s34
      %s37 = sadd.s32 %s24, %s25
      %p38 = scmp.lt.s32.totalorder %s37, 0
      %s39 = scalar_select %p38, %s37, 0
      %s40 = sadd.s32 %s36, %s32
      %p41 = scmp.lt.s32.totalorder %s40, 0
      %s42 = scalar_select %p41, %s40, 0
      %s43 = ssub.s32 %s39, %s42
      %p44 = scmp.eq.s32.totalorder %s43, 0
      %s46 = sadd.s32 %s45, 1
      %s47 = scalar_select %p44, %s45, %s46
      %p50 = pneg %p44
      %p51 = scmp.eq.s32.totalorder %s17, 1
      %p52 = por %p50, %p51
      %p53 = scmp.ne.s32.totalorder %s45, %s48
      %p54 = scmp.eq.s32.totalorder %s17, 0
      %p55 = por %p53, %p54
      %p56 = scmp.ne.s32.totalorder %s45, %s48
      %p57 = scmp.eq.s32.totalorder %s22, 1
      %p58 = por %p56, %p57
      %p59 = scmp.ne.s32.totalorder %s48, %s49
      %p60 = scmp.eq.s32.totalorder %s22, 0
      %p61 = por %p59, %p60
      %p62 = scmp.ne.s32.totalorder %s48, %s49
      %p63 = scmp.eq.s32.totalorder %s23, 1
      %p64 = por %p62, %p63
      %p66 = scmp.ne.s32.totalorder %s49, %s65
      %p67 = scmp.eq.s32.totalorder %s23, 0
      %p68 = por %p66, %p67
      %s69 = sadd.s32 %s24, %s25
      %p70 = scmp.lt.s32.totalorder %s69, 0
      %s71 = scalar_select %p70, %s69, 0
      %s72 = sadd.s32 %s36, %s32
      %p73 = scmp.lt.s32.totalorder %s72, 0
      %s74 = scalar_select %p73, %s72, 0
      %s75 = ssub.s32 %s71, %s74
      %p76 = scmp.eq.s32.totalorder %s75, 0
      %s78 = sadd.s32 %s77, 1
      %s79 = scalar_select %p76, %s77, %s78
      %p82 = pneg %p76
      %p83 = scmp.eq.s32.totalorder %s17, 1
      %p84 = por %p82, %p83
      %p85 = scmp.ne.s32.totalorder %s77, %s80
      %p86 = scmp.eq.s32.totalorder %s17, 0
      %p87 = por %p85, %p86
      %p88 = scmp.ne.s32.totalorder %s77, %s80
      %p89 = scmp.eq.s32.totalorder %s22, 1
      %p90 = por %p88, %p89
      %p91 = scmp.ne.s32.totalorder %s80, %s81
      %p92 = scmp.eq.s32.totalorder %s22, 0
      %p93 = por %p91, %p92
      %p94 = scmp.ne.s32.totalorder %s80, %s81
      %p95 = scmp.eq.s32.totalorder %s23, 1
      %p96 = por %p94, %p95
      %p98 = scmp.ne.s32.totalorder %s81, %s97
      %p99 = scmp.eq.s32.totalorder %s23, 0
      %p100 = por %p98, %p99
      %s101 = ssub.s32 %s24, %s36
      %p102 = scmp.eq.s32.totalorder %s101, 0
      %s104 = sadd.s32 %s103, 1
      %s105 = scalar_select %p102, %s103, %s104
      %p108 = pneg %p102
      %p109 = scmp.eq.s32.totalorder %s17, 1
      %p110 = por %p108, %p109
      %p111 = scmp.ne.s32.totalorder %s103, %s106
      %p112 = scmp.eq.s32.totalorder %s17, 0
      %p113 = por %p111, %p112
      %p114 = scmp.ne.s32.totalorder %s103, %s106
      %p115 = scmp.eq.s32.totalorder %s22, 1
      %p116 = por %p114, %p115
      %p117 = scmp.ne.s32.totalorder %s106, %s107
      %p118 = scmp.eq.s32.totalorder %s22, 0
      %p119 = por %p117, %p118
      %p120 = scmp.ne.s32.totalorder %s106, %s107
      %p121 = scmp.eq.s32.totalorder %s23, 1
      %p122 = por %p120, %p121
      %p124 = scmp.ne.s32.totalorder %s107, %s123
      %p125 = scmp.eq.s32.totalorder %s23, 0
      %p126 = por %p124, %p125
      %p127 = scmp.le.s32.totalorder 1, %s17
      %p128 = scmp.lt.s32.totalorder %s17, 3
      %p129 = pnand %p127, %p128
      %p130 = pneg %p129
      // Predicated region
      $region9: #{tpu_custom_call.1} parent=5 // pred_check
        _
      $region10: #{tpu_custom_call.1} parent=5 // pred_check_branch
        %132 = sbr.rel (%p129) target = $region12
      $region11: #{tpu_custom_call.1} parent=5 // pred_region
        %s133 = ssub.s32 %s17, 1
      $region12: #{tpu_custom_call.1} parent=5 // pred_fallthru
        _
      %p134 = scmp.lt.s32.totalorder %s17, 2
      // Predicated region
      $region13: #{tpu_custom_call.1} parent=5 // pred_check
        %p135 = pneg %p134
      $region14: #{tpu_custom_call.1} parent=5 // pred_check_branch
        %137 = sbr.rel (%p135) target = $region16
      $region15: #{tpu_custom_call.1} parent=5 // pred_region
        // Predicated region
        $region17: #{tpu_custom_call.1} parent=15 // pred_check
          %p138 = pneg %p55
        $region18: #{tpu_custom_call.1} parent=15 // pred_check_branch
          %140 = sbr.rel (%p138) target = $region20
        $region19: #{tpu_custom_call.1} parent=15 // pred_region
          %s141 = sand.u32 %s45, 1
          %s142 = scalar_lea.sflag [#allocation3], %s141
          %s143 = sand.u32 %s45, 1
          %s144 = smul.addr %s143, 16
          %s145 = scalar_lea.vmem [#allocation2], %s144
          %s146 = sadd.s32 %s24, %s25
          %p147 = scmp.lt.s32.totalorder %s146, 0
          %s148 = scalar_select %p147, %s146, 0
          %s149 = smul.u32 2, %s148
          %s151 = ssub.s32 256, 256
          %152 = vsyncadd %s142, %s151
          %s153 = smul.addr %s149, 128
          %s154 = scalar_lea.hbm %s0, %s153
          %s155 = sshll.u32 %s145, 4
          %s156 = int_to_ptr.vmem [resolvable:$true] %s155
          %161 = dma.hbm_to_vmem [thread:$0]  %s154, 256, %s156, %s142, 128, 128, 8
        $region20: #{tpu_custom_call.1} parent=15 // pred_fallthru
          _
        // Predicated region
        $region21: #{tpu_custom_call.1} parent=15 // pred_check
          %p162 = pneg %p87
        $region22: #{tpu_custom_call.1} parent=15 // pred_check_branch
          %164 = sbr.rel (%p162) target = $region24
        $region23: #{tpu_custom_call.1} parent=15 // pred_region
          %s165 = sand.u32 %s77, 1
          %s166 = scalar_lea.sflag [#allocation6], %s165
          %s167 = sand.u32 %s77, 1
          %s168 = smul.addr %s167, 16
          %s169 = scalar_lea.vmem [#allocation5], %s168
          %s170 = sadd.s32 %s24, %s25
          %p171 = scmp.lt.s32.totalorder %s170, 0
          %s172 = scalar_select %p171, %s170, 0
          %s173 = smul.u32 2, %s172
          %s175 = ssub.s32 256, 256
          %176 = vsyncadd %s166, %s175
          %s177 = smul.addr %s173, 128
          %s178 = scalar_lea.hbm %s1, %s177
          %s179 = sshll.u32 %s169, 4
          %s180 = int_to_ptr.vmem [resolvable:$true] %s179
          %185 = dma.hbm_to_vmem [thread:$0]  %s178, 256, %s180, %s166, 128, 128, 8
        $region24: #{tpu_custom_call.1} parent=15 // pred_fallthru
          _
      $region16: #{tpu_custom_call.1} parent=5 // pred_fallthru
        _
      %p186 = scmp.le.s32.totalorder 1, %s17
      %p187 = scmp.lt.s32.totalorder %s17, 3
      %p188 = pnand %p186, %p187
      %p189 = pneg %p188
      // Predicated region
      $region25: #{tpu_custom_call.1} parent=5 // pred_check
        _
      $region26: #{tpu_custom_call.1} parent=5 // pred_check_branch
        %191 = sbr.rel (%p188) target = $region28
      $region27: #{tpu_custom_call.1} parent=5 // pred_region
        %s192 = ssub.s32 %s17, 1
        %s193 = sand.u32 %s48, 1
        %s194 = scalar_lea.sflag [#allocation3], %s193
        %s195 = sand.u32 %s48, 1
        %s196 = smul.addr %s195, 16
        %s197 = scalar_lea.vmem [#allocation2], %s196
        // Predicated region
        $region29: #{tpu_custom_call.1} parent=27 // pred_check
          %p198 = pneg %p61
        $region30: #{tpu_custom_call.1} parent=27 // pred_check_branch
          %200 = sbr.rel (%p198) target = $region32
        $region31: #{tpu_custom_call.1} parent=27 // pred_region
          %201 = dma.done %s194, 256
        $region32: #{tpu_custom_call.1} parent=27 // pred_fallthru
          _
        %s202 = sand.u32 %s80, 1
        %s203 = scalar_lea.sflag [#allocation6], %s202
        %s204 = sand.u32 %s80, 1
        %s205 = smul.addr %s204, 16
        %s206 = scalar_lea.vmem [#allocation5], %s205
        // Predicated region
        $region33: #{tpu_custom_call.1} parent=27 // pred_check
          %p207 = pneg %p93
        $region34: #{tpu_custom_call.1} parent=27 // pred_check_branch
          %209 = sbr.rel (%p207) target = $region36
        $region35: #{tpu_custom_call.1} parent=27 // pred_region
          %210 = dma.done %s203, 256
        $region36: #{tpu_custom_call.1} parent=27 // pred_fallthru
          _
        %s211 = sand.u32 %s48, 1
        %s212 = scalar_lea.sflag [#allocation3], %s211
        %s213 = sand.u32 %s48, 1
        %s214 = smul.addr %s213, 16
        %s215 = scalar_lea.vmem [#allocation2], %s214
        %p216 = pneg %p61
        %p217 = pneg %p58
        %s218 = sand.u32 %s80, 1
        %s219 = scalar_lea.sflag [#allocation6], %s218
        %s220 = sand.u32 %s80, 1
        %s221 = smul.addr %s220, 16
        %s222 = scalar_lea.vmem [#allocation5], %s221
        %p223 = pneg %p93
        %p224 = pneg %p90
        %p225 = pneg %p119
        %p226 = pneg %p116
        %s227 = sand.u32 %s106, 1
        %s228 = scalar_lea.sflag [#allocation4], %s227
        %s229 = sand.u32 %s106, 1
        %s230 = smul.addr %s229, 8
        %s231 = scalar_lea.vmem [#allocation7], %s230
        %s232 = sadd.s32 %s26, %s27
        %p233 = scmp.lt.s32.totalorder %s232, 0
        %s234 = scalar_select %p233, %s232, 0
        %s235 = smul.u32 2, %s234
        %s236 = sadd.s32 %s26, %s27
        %p237 = scmp.lt.s32.totalorder %s236, 0
        %s238 = scalar_select %p237, %s236, 0
        %s239 = smul.u32 2, %s238
        %s240 = sadd.s32 %s26, %s27
        %p241 = scmp.eq.s32.totalorder %s27, 0
        // Predicated region
        $region37: #{tpu_custom_call.1} parent=27 // pred_check
          %p242 = pneg %p241
        $region38: #{tpu_custom_call.1} parent=27 // pred_check_branch
          %244 = sbr.rel (%p242) target = $region40
        $region39: #{tpu_custom_call.1} parent=27 // pred_region
          %245 = vst [vmem:[%s231] sm:$0xff] 0.0
        $region40: #{tpu_custom_call.1} parent=27 // pred_fallthru
          _
        %v246 = vld [vmem:[%s197] sm:$0xff]
        %v247 = vld [vmem:[%s197 + $0x8] sm:$0xff]
        %v248 = vld [vmem:[%s206] sm:$0xff]
        %v249 = vld [vmem:[%s206 + $0x8] sm:$0xff]
        %v250 = vmax.f32 %v246, 0.001
        %v251 = vmax.f32 %v247, 0.001
        %v252 = vmin.f32 %v250, 0.999
        %v253 = vmin.f32 %v251, 0.999
        %v254 = vsub.f32 1.0, %v252
        %v255 = vsub.f32 1.0, %v253
        %v256 = vmul.f32 %v254, %v254
        %v257 = vmul.f32 %v255, %v255
        %v258 = vmul.f32 %v248, %v256
        %v259 = vmul.f32 %v249, %v257
        %v260 = vlog2.pop %v252
        %v261 = vmul.f32 %v260, 0.6931472
        %v262 = vlog2.pop %v253
        %v263 = vmul.f32 %v262, 0.6931472
        %v264 = vmul.f32 %v258, %v261
        %v265 = vmul.f32 %v259, %v263
        %v266 = vsub.f32 1.0, %v248
        %v267 = vsub.f32 1.0, %v249
        %v268 = vmul.f32 %v252, %v252
        %v269 = vmul.f32 %v253, %v253
        %v270 = vmul.f32 %v266, %v268
        %v271 = vmul.f32 %v267, %v269
        %v272 = vlog2.pop %v254
        %v273 = vmul.f32 %v272, 0.6931472
        %v274 = vlog2.pop %v255
        %v275 = vmul.f32 %v274, 0.6931472
        %v276 = vmul.f32 %v270, %v273
        %v277 = vmul.f32 %v271, %v275
        %v278 = vadd.f32 %v264, %v276
        %v279 = vadd.f32 %v265, %v277
        %v280 = vsub.f32 0.0, %v278
        %v281 = vsub.f32 0.0, %v279
        %p282 = scmp.le.s32.totalorder %s240, 0
        // Predicated region
        $region41: #{tpu_custom_call.1} parent=27 // pred_check
          %p283 = pneg %p282
        $region42: #{tpu_custom_call.1} parent=27 // pred_check_branch
          %285 = sbr.rel (%p283) target = $region44
        $region43: #{tpu_custom_call.1} parent=27 // pred_region
          %v286 = vld [vmem:[%s231] sm:$0xff]
          %v287 = vadd.f32 %v280, %v281
          %v288 = vadd.f32 %v286, %v287
          %289 = vst [vmem:[%s231] sm:$0xff] %v288
        $region44: #{tpu_custom_call.1} parent=27 // pred_fallthru
          _
        %s290 = sand.u32 %s106, 1
        %s291 = scalar_lea.sflag [#allocation4], %s290
        %s292 = sand.u32 %s106, 1
        %s293 = smul.addr %s292, 8
        %s294 = scalar_lea.vmem [#allocation7], %s293
        // Predicated region
        $region45: #{tpu_custom_call.1} parent=27 // pred_check
          %p295 = pneg %p116
        $region46: #{tpu_custom_call.1} parent=27 // pred_check_branch
          %297 = sbr.rel (%p295) target = $region48
        $region47: #{tpu_custom_call.1} parent=27 // pred_region
          %s299 = ssub.s32 128, 128
          %300 = vsyncadd %s291, %s299
          %s301 = smul.addr %s26, 128
          %s302 = scalar_lea.hbm %s2, %s301
          %s304 = sshll.u32 %s294, 4
          %s305 = int_to_ptr.vmem [resolvable:$true] %s304
          %307 = dma.vmem_to_hbm [thread:$0]  %s305, 128, %s302, %s291
        $region48: #{tpu_custom_call.1} parent=27 // pred_fallthru
          _
      $region28: #{tpu_custom_call.1} parent=5 // pred_fallthru
        _
      %p308 = scmp.le.s32.totalorder 2, %s17
      // Predicated region
      $region49: #{tpu_custom_call.1} parent=5 // pred_check
        %p309 = pneg %p308
      $region50: #{tpu_custom_call.1} parent=5 // pred_check_branch
        %311 = sbr.rel (%p309) target = $region52
      $region51: #{tpu_custom_call.1} parent=5 // pred_region
        %s312 = ssub.s32 %s17, 2
        // Predicated region
        $region53: #{tpu_custom_call.1} parent=51 // pred_check
          %p313 = pneg %p122
        $region54: #{tpu_custom_call.1} parent=51 // pred_check_branch
          %315 = sbr.rel (%p313) target = $region56
        $region55: #{tpu_custom_call.1} parent=51 // pred_region
          %s316 = sand.u32 %s107, 1
          %s317 = scalar_lea.sflag [#allocation4], %s316
          %s318 = sand.u32 %s107, 1
          %s319 = smul.addr %s318, 8
          %s320 = scalar_lea.vmem [#allocation7], %s319
          %321 = dma.done %s317, 128
        $region56: #{tpu_custom_call.1} parent=51 // pred_fallthru
          _
      $region52: #{tpu_custom_call.1} parent=5 // pred_fallthru
        _
    $region6: #{tpu_custom_call.1} parent=1 // loop_footer
      %s21 = sadd.s32 1, %s17
    $region7: #{tpu_custom_call.1} parent=1 // loop_footer_branch
      %16 = sbr.rel target = $region3
    $region8: #{tpu_custom_call.1} parent=1 // loop_exit
      _
    %322 = vsyncpa [#allocation3], 1
    %s323 = scalar_lea.sflag [#allocation3], 1
    %324 = vsyncpa %s323, 1
    %325 = vsyncpa [#allocation6], 1
    %s326 = scalar_lea.sflag [#allocation6], 1
    %327 = vsyncpa %s326, 1
    %328 = vsyncpa [#allocation4], 1
    %s329 = scalar_lea.sflag [#allocation4], 1
    %330 = vsyncpa %s329, 1

</llo_original>
